<compile_context>
chip_gen: v7x
topology: tpu7x:2x2x1
jax: 0.10.0
libtpu: 0.0.40
codegen_flags: <defaults>
</compile_context>

<pallas_src>
import jax
import jax.numpy as jnp
from jax.experimental import pallas as pl
from jax.experimental.pallas import tpu as pltpu

HIDDEN_IN = 768            # BERT hidden size (CLS feature dim)
HIDDEN_1 = 256             # hidden_size
HIDDEN_2 = 128             # hidden_size // 2
NUM_REC = 5                # num_recommendations
OUT_PAD = 128              # lane-dense padded logits width (multiple of 128)
MAX_TILE_B = 128           # batch tile (fills the 128-row MXU on v5e; fine on v6e/v7x)


def _round_up(v, m):
    return (v + m - 1) // m * m


def _mlp_head_kernel(x_ref, w1_ref, b1_ref, w2_ref, b2_ref, w3_ref, b3_ref, o_ref):
    # Layer 1: Linear(768 -> 256) + ReLU   (Dropout is identity at inference)
    h1 = jnp.dot(x_ref[...], w1_ref[...], preferred_element_type=jnp.float32)
    h1 = jnp.maximum(h1 + b1_ref[...], 0.0).astype(jnp.bfloat16)
    # Layer 2: Linear(256 -> 128) + ReLU
    h2 = jnp.dot(h1, w2_ref[...], preferred_element_type=jnp.float32)
    h2 = jnp.maximum(h2 + b2_ref[...], 0.0).astype(jnp.bfloat16)
    # Layer 3: Linear(128 -> 128 padded); only the first NUM_REC columns are real.
    logits = jnp.dot(h2, w3_ref[...], preferred_element_type=jnp.float32) + b3_ref[...]
    o_ref[...] = logits.astype(o_ref.dtype)


def dental_recommendation_head(features, params, *, tile_b=MAX_TILE_B):
    """features: [B, 768] float32 (BERT CLS features). Returns [B, 5] float32 logits."""
    B = features.shape[0]

    # Batch tile: at least the 8-row sublane tile, at most `tile_b`; pad B to a multiple of it.
    tb = min(tile_b, _round_up(B, 8))
    b_pad = _round_up(B, tb)

    # bf16 inputs / weights, f32 accumulation; biases stay f32.
    x = features.astype(jnp.bfloat16)
    if b_pad != B:
        x = jnp.pad(x, ((0, b_pad - B), (0, 0)))

    w1 = params["w1"].astype(jnp.bfloat16)
    w2 = params["w2"].astype(jnp.bfloat16)
    # Lane-pad the final layer from 5 -> 128 output columns with zeros (lane-dense stores).
    w3 = jnp.pad(params["w3"], ((0, 0), (0, OUT_PAD - NUM_REC))).astype(jnp.bfloat16)
    b1 = params["b1"].astype(jnp.float32)
    b2 = params["b2"].astype(jnp.float32)
    b3 = jnp.pad(params["b3"], ((0, 0), (0, OUT_PAD - NUM_REC))).astype(jnp.float32)

    grid = (b_pad // tb,)
    flops = 2 * b_pad * (HIDDEN_IN * HIDDEN_1 + HIDDEN_1 * HIDDEN_2 + HIDDEN_2 * OUT_PAD)
    bytes_accessed = (
        x.size * 2 + w1.size * 2 + w2.size * 2 + w3.size * 2
        + (b1.size + b2.size + b3.size) * 4
        + b_pad * OUT_PAD * 4
    )

    logits_padded = pl.pallas_call(
        _mlp_head_kernel,
        out_shape=jax.ShapeDtypeStruct((b_pad, OUT_PAD), jnp.float32),
        grid=grid,
        in_specs=[
            pl.BlockSpec((tb, HIDDEN_IN), lambda i: (i, 0)),        # x tile     [tb, 768] bf16
            pl.BlockSpec((HIDDEN_IN, HIDDEN_1), lambda i: (0, 0)),  # w1 resident [768, 256]
            pl.BlockSpec((1, HIDDEN_1), lambda i: (0, 0)),          # b1          [1, 256]
            pl.BlockSpec((HIDDEN_1, HIDDEN_2), lambda i: (0, 0)),   # w2 resident [256, 128]
            pl.BlockSpec((1, HIDDEN_2), lambda i: (0, 0)),          # b2          [1, 128]
            pl.BlockSpec((HIDDEN_2, OUT_PAD), lambda i: (0, 0)),    # w3 resident [128, 128]
            pl.BlockSpec((1, OUT_PAD), lambda i: (0, 0)),           # b3          [1, 128]
        ],
        out_specs=pl.BlockSpec((tb, OUT_PAD), lambda i: (i, 0)),
        compiler_params=pltpu.CompilerParams(
            dimension_semantics=("parallel",),  # shards batch tiles across v7x's 2 TCs
        ),
        cost_estimate=pl.CostEstimate(
            flops=flops, transcendentals=0, bytes_accessed=bytes_accessed
        ),
    )(x, w1, b1, w2, b2, w3, b3)

    # Strip batch padding and the lane padding of the logits.
    return logits_padded[:B, :NUM_REC]


def init_params(key):
    """Deterministic synthetic init matching nn.Linear shapes (stored transposed: [in, out])."""
    k1, k2, k3 = jax.random.split(key, 3)

    def linear(k, fan_in, fan_out):
        kw, kb = jax.random.split(k)
        bound = 1.0 / jnp.sqrt(fan_in)
        w = jax.random.uniform(kw, (fan_in, fan_out), jnp.float32, -bound, bound)
        b = jax.random.uniform(kb, (1, fan_out), jnp.float32, -bound, bound)
        return w, b

    w1, b1 = linear(k1, HIDDEN_IN, HIDDEN_1)
    w2, b2 = linear(k2, HIDDEN_1, HIDDEN_2)
    w3, b3 = linear(k3, HIDDEN_2, NUM_REC)
    return {"w1": w1, "b1": b1, "w2": w2, "b2": b2, "w3": w3, "b3": b3}


def reference_head(features, p):
    h1 = jnp.maximum(features @ p["w1"] + p["b1"], 0.0)
    h2 = jnp.maximum(h1 @ p["w2"] + p["b2"], 0.0)
    return h2 @ p["w3"] + p["b3"]


if __name__ == "__main__":
    key = jax.random.PRNGKey(0)
    k_feat, k_params = jax.random.split(key)

    # TODO(synk): the frozen pretrained BERT backbone has no clean Pallas equivalent without a
    # checkpoint; synthesize its CLS-token output features directly.
    B = 2
    features = jax.random.normal(k_feat, (B, HIDDEN_IN), dtype=jnp.float32)
    params = init_params(k_params)

    logits = dental_recommendation_head(features, params)
    jax.block_until_ready(logits)

    # Sanity-check against a pure-f32 JAX reference (kernel runs bf16 inputs / f32 accumulation).
    ref = reference_head(features, params)
    assert logits.shape == (B, NUM_REC)
    assert jnp.allclose(logits, ref, atol=3e-2, rtol=3e-2), (
        float(jnp.max(jnp.abs(logits - ref)))
    )

    print("KERNEL_OK")
</pallas_src>

<mosaic_0001>
module attributes {stable_mosaic.version = 11 : i64} {
  func.func @_mlp_head_kernel(%arg0: i32, %arg1: memref<8x768xbf16, #tpu.memory_space<vmem>>, %arg2: memref<768x256xbf16, #tpu.memory_space<vmem>>, %arg3: memref<1x256xf32, #tpu.memory_space<vmem>>, %arg4: memref<256x128xbf16, #tpu.memory_space<vmem>>, %arg5: memref<1x128xf32, #tpu.memory_space<vmem>>, %arg6: memref<128x128xbf16, #tpu.memory_space<vmem>>, %arg7: memref<1x128xf32, #tpu.memory_space<vmem>>, %arg8: memref<8x128xf32, #tpu.memory_space<vmem>>) attributes {dimension_semantics = [#tpu.dimension_semantics<parallel>], iteration_bounds = array<i64: 1>, scalar_prefetch = 0 : i64, scratch_operands = 0 : i64, tpu.core_type = #tpu.core_type<tc>, window_params = [{transform_indices = @transform_0, window_bounds = array<i64: 8, 768>}, {pipeline_mode = #tpu.pipeline_mode<synchronous>, transform_indices = @transform_1, window_bounds = array<i64: 768, 256>}, {pipeline_mode = #tpu.pipeline_mode<synchronous>, transform_indices = @transform_2, window_bounds = array<i64: 1, 256>}, {pipeline_mode = #tpu.pipeline_mode<synchronous>, transform_indices = @transform_3, window_bounds = array<i64: 256, 128>}, {pipeline_mode = #tpu.pipeline_mode<synchronous>, transform_indices = @transform_4, window_bounds = array<i64: 1, 128>}, {pipeline_mode = #tpu.pipeline_mode<synchronous>, transform_indices = @transform_5, window_bounds = array<i64: 128, 128>}, {pipeline_mode = #tpu.pipeline_mode<synchronous>, transform_indices = @transform_6, window_bounds = array<i64: 1, 128>}, {transform_indices = @transform_7, window_bounds = array<i64: 8, 128>}]} {
    %c0 = arith.constant 0 : index
    %c0_0 = arith.constant 0 : index
    %0 = vector.load %arg1[%c0, %c0_0] : memref<8x768xbf16, #tpu.memory_space<vmem>>, vector<8x768xbf16>
    %c0_1 = arith.constant 0 : index
    %c0_2 = arith.constant 0 : index
    %1 = vector.load %arg2[%c0_1, %c0_2] : memref<768x256xbf16, #tpu.memory_space<vmem>>, vector<768x256xbf16>
    %cst = arith.constant dense<0.000000e+00> : vector<8x256xf32>
    %2 = tpu.matmul %0, %1, %cst {dimension_numbers = #tpu.dot_dimension_numbers<[1], [0], [0], [1], [0, 0, 1, 1], [], []>} : vector<8x768xbf16>, vector<768x256xbf16>, vector<8x256xf32> -> vector<8x256xf32>
    %c0_3 = arith.constant 0 : index
    %c0_4 = arith.constant 0 : index
    %3 = vector.load %arg3[%c0_3, %c0_4] : memref<1x256xf32, #tpu.memory_space<vmem>>, vector<1x256xf32>
    %4 = vector.broadcast %3 : vector<1x256xf32> to vector<8x256xf32>
    %5 = arith.addf %2, %4 : vector<8x256xf32>
    %cst_5 = arith.constant 0.000000e+00 : f32
    %6 = vector.broadcast %cst_5 : f32 to vector<8x256xf32>
    %7 = arith.maximumf %5, %6 : vector<8x256xf32>
    %8 = arith.truncf %7 : vector<8x256xf32> to vector<8x256xbf16>
    %c0_6 = arith.constant 0 : index
    %c0_7 = arith.constant 0 : index
    %9 = vector.load %arg4[%c0_6, %c0_7] : memref<256x128xbf16, #tpu.memory_space<vmem>>, vector<256x128xbf16>
    %cst_8 = arith.constant dense<0.000000e+00> : vector<8x128xf32>
    %10 = tpu.matmul %8, %9, %cst_8 {dimension_numbers = #tpu.dot_dimension_numbers<[1], [0], [0], [1], [0, 0, 1, 1], [], []>} : vector<8x256xbf16>, vector<256x128xbf16>, vector<8x128xf32> -> vector<8x128xf32>
    %c0_9 = arith.constant 0 : index
    %c0_10 = arith.constant 0 : index
    %11 = vector.load %arg5[%c0_9, %c0_10] : memref<1x128xf32, #tpu.memory_space<vmem>>, vector<1x128xf32>
    %12 = vector.broadcast %11 : vector<1x128xf32> to vector<8x128xf32>
    %13 = arith.addf %10, %12 : vector<8x128xf32>
    %cst_11 = arith.constant 0.000000e+00 : f32
    %14 = vector.broadcast %cst_11 : f32 to vector<8x128xf32>
    %15 = arith.maximumf %13, %14 : vector<8x128xf32>
    %16 = arith.truncf %15 : vector<8x128xf32> to vector<8x128xbf16>
    %c0_12 = arith.constant 0 : index
    %c0_13 = arith.constant 0 : index
    %17 = vector.load %arg6[%c0_12, %c0_13] : memref<128x128xbf16, #tpu.memory_space<vmem>>, vector<128x128xbf16>
    %cst_14 = arith.constant dense<0.000000e+00> : vector<8x128xf32>
    %18 = tpu.matmul %16, %17, %cst_14 {dimension_numbers = #tpu.dot_dimension_numbers<[1], [0], [0], [1], [0, 0, 1, 1], [], []>} : vector<8x128xbf16>, vector<128x128xbf16>, vector<8x128xf32> -> vector<8x128xf32>
    %c0_15 = arith.constant 0 : index
    %c0_16 = arith.constant 0 : index
    %19 = vector.load %arg7[%c0_15, %c0_16] : memref<1x128xf32, #tpu.memory_space<vmem>>, vector<1x128xf32>
    %20 = vector.broadcast %19 : vector<1x128xf32> to vector<8x128xf32>
    %21 = arith.addf %18, %20 : vector<8x128xf32>
    %c0_17 = arith.constant 0 : index
    %c0_18 = arith.constant 0 : index
    %22 = vector.load %arg8[%c0_17, %c0_18] : memref<8x128xf32, #tpu.memory_space<vmem>>, vector<8x128xf32>
    tpu.vector_store %arg8[%c0_17, %c0_18], %21 {strides = array<i32>} : memref<8x128xf32, #tpu.memory_space<vmem>>, vector<8x128xf32>,
    return
  }
  func.func @transform_0(%arg0: i32) -> (i32, i32) {
    %c0_i32 = arith.constant 0 : i32
    %c0_i32_0 = arith.constant 0 : i32
    return %arg0, %c0_i32 : i32, i32
  }
  func.func @transform_1(%arg0: i32) -> (i32, i32) {
    %c0_i32 = arith.constant 0 : i32
    %c0_i32_0 = arith.constant 0 : i32
    %c0_i32_1 = arith.constant 0 : i32
    return %c0_i32, %c0_i32_0 : i32, i32
  }
  func.func @transform_2(%arg0: i32) -> (i32, i32) {
    %c0_i32 = arith.constant 0 : i32
    %c0_i32_0 = arith.constant 0 : i32
    %c0_i32_1 = arith.constant 0 : i32
    return %c0_i32, %c0_i32_0 : i32, i32
  }
  func.func @transform_3(%arg0: i32) -> (i32, i32) {
    %c0_i32 = arith.constant 0 : i32
    %c0_i32_0 = arith.constant 0 : i32
    %c0_i32_1 = arith.constant 0 : i32
    return %c0_i32, %c0_i32_0 : i32, i32
  }
  func.func @transform_4(%arg0: i32) -> (i32, i32) {
    %c0_i32 = arith.constant 0 : i32
    %c0_i32_0 = arith.constant 0 : i32
    %c0_i32_1 = arith.constant 0 : i32
    return %c0_i32, %c0_i32_0 : i32, i32
  }
  func.func @transform_5(%arg0: i32) -> (i32, i32) {
    %c0_i32 = arith.constant 0 : i32
    %c0_i32_0 = arith.constant 0 : i32
    %c0_i32_1 = arith.constant 0 : i32
    return %c0_i32, %c0_i32_0 : i32, i32
  }
  func.func @transform_6(%arg0: i32) -> (i32, i32) {
    %c0_i32 = arith.constant 0 : i32
    %c0_i32_0 = arith.constant 0 : i32
    %c0_i32_1 = arith.constant 0 : i32
    return %c0_i32, %c0_i32_0 : i32, i32
  }
  func.func @transform_7(%arg0: i32) -> (i32, i32) {
    %c0_i32 = arith.constant 0 : i32
    %c0_i32_0 = arith.constant 0 : i32
    return %arg0, %c0_i32 : i32, i32
  }
}

</mosaic_0001>

<llo_original>
// kernel: tpu_custom_call.1
$region0: #{tpu_custom_call.1}
  #allocation0 [shape = 'u32[]', space=smem, size = 0x4, offset = 0x4, fixed_abs, tag = 'smem constant byte address 0x4 - core index']
  #allocation1 [shape = 'u32[144,128]{1,0:T(1,128)}', space=vmem, size = 0x12000, scoped, tag = 'internal scratch']
  %s0 = inlined_call_operand.hbm [shape: bf16[8,768], index: 0, kind: input, shape index: {}]
  %s1 = inlined_call_operand.hbm [shape: bf16[768,256], index: 1, kind: input, shape index: {}]
  %s2 = inlined_call_operand.vmem [shape: f32[1,256], index: 2, kind: input, shape index: {}]
  %s3 = inlined_call_operand.hbm [shape: bf16[256,128], index: 3, kind: input, shape index: {}]
  %s4 = inlined_call_operand.vmem [shape: f32[1,128], index: 4, kind: input, shape index: {}]
  %s5 = inlined_call_operand.hbm [shape: bf16[128,128], index: 5, kind: input, shape index: {}]
  %s6 = inlined_call_operand.vmem [shape: f32[1,128], index: 6, kind: input, shape index: {}]
  %s7 = inlined_call_operand.hbm [shape: f32[8,128], index: 7, kind: output, shape index: {}]
  %s8 = sld [smem:[#allocation0]]
  $region54: #{tpu_custom_call.1} parent=0
    _
  %s10 = ssub.s32 1, %s8
  %s11 = scalar_select 0, %s10, %s8
  $region1: #{tpu_custom_call.1} parent=0
    #allocation2 [shape = 'u8[12288]{0}', space=vmem, size = 0x3000, scoped, tag = 'input window, operand 0, single buffered']
    #allocation3 [shape = 's32[1]{0}', space=sflag, size = 0x4, scoped, tag = 'scoped memory for tpu_custom_call.1']
    #allocation4 [shape = 's32[1]{0}', space=sflag, size = 0x4, scoped, tag = 'scoped memory for tpu_custom_call.1']
    #allocation5 [shape = 'u8[393216]{0}', space=vmem, size = 0x60000, scoped, tag = 'input window, operand 1, single buffered']
    #allocation6 [shape = 's32[1]{0}', space=sflag, size = 0x4, scoped, tag = 'scoped memory for tpu_custom_call.1']
    #allocation7 [shape = 'u8[65536]{0}', space=vmem, size = 0x10000, scoped, tag = 'input window, operand 3, single buffered']
    #allocation8 [shape = 'u8[32768]{0}', space=vmem, size = 0x8000, scoped, tag = 'input window, operand 5, single buffered']
    #allocation9 [shape = 's32[1]{0}', space=sflag, size = 0x4, scoped, tag = 'scoped memory for tpu_custom_call.1']
    #allocation10 [shape = 'u8[4096]{0}', space=vmem, size = 0x1000, scoped, tag = 'output window, operand 0, single buffered']
    %12 = vsyncpa [#allocation3], 0
    %13 = vsyncpa [#allocation6], 0
    %14 = vsyncpa [#allocation9], 0
    %15 = vsyncpa [#allocation4], 0
    // Predicated region
    $region2: #{tpu_custom_call.1} parent=1 // pred_check
      _
    $region3: #{tpu_custom_call.1} parent=1 // pred_check_branch
      %17 = sbr.rel (0) target = $region5
    $region4: #{tpu_custom_call.1} parent=1 // pred_region
      %s19 = ssub.s32 384, 384
      %20 = vsyncadd [#allocation3], %s19
      %s22 = sshll.u32 [#allocation2], 4
      %s23 = int_to_ptr.vmem [resolvable:$true] %s22
      %25 = dma.hbm_to_vmem [thread:$0]  %s0, 384, %s23, [#allocation3]
    $region5: #{tpu_custom_call.1} parent=1 // pred_fallthru
      _
    // Predicated region
    $region6: #{tpu_custom_call.1} parent=1 // pred_check
      _
    $region7: #{tpu_custom_call.1} parent=1 // pred_check_branch
      %27 = sbr.rel (0) target = $region9
    $region8: #{tpu_custom_call.1} parent=1 // pred_region
      %s29 = ssub.s32 12288, 12288
      %30 = vsyncadd [#allocation6], %s29
      %s31 = sshll.u32 [#allocation5], 4
      %s32 = int_to_ptr.vmem [resolvable:$true] %s31
      %37 = dma.hbm_to_vmem [thread:$0]  %s1, 12288, %s32, [#allocation6], 128, 128, 8
    $region9: #{tpu_custom_call.1} parent=1 // pred_fallthru
      _
    // Predicated region
    $region10: #{tpu_custom_call.1} parent=1 // pred_check
      _
    $region11: #{tpu_custom_call.1} parent=1 // pred_check_branch
      %39 = sbr.rel (0) target = $region13
    $region12: #{tpu_custom_call.1} parent=1 // pred_region
      _
    $region13: #{tpu_custom_call.1} parent=1 // pred_fallthru
      _
    // Predicated region
    $region14: #{tpu_custom_call.1} parent=1 // pred_check
      _
    $region15: #{tpu_custom_call.1} parent=1 // pred_check_branch
      %41 = sbr.rel (0) target = $region17
    $region16: #{tpu_custom_call.1} parent=1 // pred_region
      %s43 = ssub.s32 2048, 2048
      %44 = vsyncadd [#allocation6], %s43
      %s45 = sshll.u32 [#allocation7], 4
      %s46 = int_to_ptr.vmem [resolvable:$true] %s45
      %51 = dma.hbm_to_vmem [thread:$0]  %s3, 2048, %s46, [#allocation6], 64, 64, 4
    $region17: #{tpu_custom_call.1} parent=1 // pred_fallthru
      _
    // Predicated region
    $region18: #{tpu_custom_call.1} parent=1 // pred_check
      _
    $region19: #{tpu_custom_call.1} parent=1 // pred_check_branch
      %53 = sbr.rel (0) target = $region21
    $region20: #{tpu_custom_call.1} parent=1 // pred_region
      _
    $region21: #{tpu_custom_call.1} parent=1 // pred_fallthru
      _
    // Predicated region
    $region22: #{tpu_custom_call.1} parent=1 // pred_check
      _
    $region23: #{tpu_custom_call.1} parent=1 // pred_check_branch
      %55 = sbr.rel (0) target = $region25
    $region24: #{tpu_custom_call.1} parent=1 // pred_region
      %s57 = ssub.s32 1024, 1024
      %58 = vsyncadd [#allocation9], %s57
      %s59 = sshll.u32 [#allocation8], 4
      %s60 = int_to_ptr.vmem [resolvable:$true] %s59
      %65 = dma.hbm_to_vmem [thread:$0]  %s5, 1024, %s60, [#allocation9], 64, 64, 4
    $region25: #{tpu_custom_call.1} parent=1 // pred_fallthru
      _
    // Predicated region
    $region26: #{tpu_custom_call.1} parent=1 // pred_check
      _
    $region27: #{tpu_custom_call.1} parent=1 // pred_check_branch
      %67 = sbr.rel (0) target = $region29
    $region28: #{tpu_custom_call.1} parent=1 // pred_region
      _
    $region29: #{tpu_custom_call.1} parent=1 // pred_fallthru
      _
    // Predicated region
    $region30: #{tpu_custom_call.1} parent=1 // pred_check
      _
    $region31: #{tpu_custom_call.1} parent=1 // pred_check_branch
      %69 = sbr.rel (0) target = $region33
    $region32: #{tpu_custom_call.1} parent=1 // pred_region
      %70 = dma.done [#allocation3], 384
    $region33: #{tpu_custom_call.1} parent=1 // pred_fallthru
      _
    // Predicated region
    $region34: #{tpu_custom_call.1} parent=1 // pred_check
      _
    $region35: #{tpu_custom_call.1} parent=1 // pred_check_branch
      %72 = sbr.rel (0) target = $region37
    $region36: #{tpu_custom_call.1} parent=1 // pred_region
      %73 = dma.done [#allocation6], 12288
    $region37: #{tpu_custom_call.1} parent=1 // pred_fallthru
      _
    // Predicated region
    $region38: #{tpu_custom_call.1} parent=1 // pred_check
      _
    $region39: #{tpu_custom_call.1} parent=1 // pred_check_branch
      %75 = sbr.rel (0) target = $region41
    $region40: #{tpu_custom_call.1} parent=1 // pred_region
      %76 = dma.done [#allocation6], 2048
    $region41: #{tpu_custom_call.1} parent=1 // pred_fallthru
      _
    // Predicated region
    $region42: #{tpu_custom_call.1} parent=1 // pred_check
      _
    $region43: #{tpu_custom_call.1} parent=1 // pred_check_branch
      %78 = sbr.rel (0) target = $region45
    $region44: #{tpu_custom_call.1} parent=1 // pred_region
      %79 = dma.done [#allocation9], 1024
    $region45: #{tpu_custom_call.1} parent=1 // pred_fallthru
      _
    %v81 = vld [vmem:[#allocation2] sm:$0xff]
    %v82 = vld [vmem:[#allocation2 + $0x8] sm:$0xff]
    %v83 = vld [vmem:[#allocation2 + $0x10] sm:$0xff]
    %v84 = vld [vmem:[#allocation5] sm:$0xff]
    %v85 = vld [vmem:[#allocation5 + $0x8] sm:$0xff]
    %v86 = vld [vmem:[#allocation5 + $0x10] sm:$0xff]
    %v87 = vld [vmem:[#allocation5 + $0x18] sm:$0xff]
    %v88 = vld [vmem:[#allocation5 + $0x20] sm:$0xff]
    %v89 = vld [vmem:[#allocation5 + $0x28] sm:$0xff]
    %v90 = vld [vmem:[#allocation5 + $0x30] sm:$0xff]
    %v91 = vld [vmem:[#allocation5 + $0x38] sm:$0xff]
    %v92 = vld [vmem:[#allocation5 + $0x40] sm:$0xff]
    %v93 = vld [vmem:[#allocation5 + $0x48] sm:$0xff]
    %v94 = vld [vmem:[#allocation5 + $0x50] sm:$0xff]
    %v95 = vld [vmem:[#allocation5 + $0x58] sm:$0xff]
    %v96 = vld [vmem:[#allocation5 + $0x60] sm:$0xff]
    %v97 = vld [vmem:[#allocation5 + $0x68] sm:$0xff]
    %v98 = vld [vmem:[#allocation5 + $0x70] sm:$0xff]
    %v99 = vld [vmem:[#allocation5 + $0x78] sm:$0xff]
    %v100 = vld [vmem:[#allocation5 + $0x80] sm:$0xff]
    %v101 = vld [vmem:[#allocation5 + $0x88] sm:$0xff]
    %v102 = vld [vmem:[#allocation5 + $0x90] sm:$0xff]
    %v103 = vld [vmem:[#allocation5 + $0x98] sm:$0xff]
    %v104 = vld [vmem:[#allocation5 + $0xa0] sm:$0xff]
    %v105 = vld [vmem:[#allocation5 + $0xa8] sm:$0xff]
    %v106 = vld [vmem:[#allocation5 + $0xb0] sm:$0xff]
    %v107 = vld [vmem:[#allocation5 + $0xb8] sm:$0xff]
    %v108 = vld [vmem:[#allocation5 + $0xc0] sm:$0xff]
    %v109 = vld [vmem:[#allocation5 + $0xc8] sm:$0xff]
    %v110 = vld [vmem:[#allocation5 + $0xd0] sm:$0xff]
    %v111 = vld [vmem:[#allocation5 + $0xd8] sm:$0xff]
    %v112 = vld [vmem:[#allocation5 + $0xe0] sm:$0xff]
    %v113 = vld [vmem:[#allocation5 + $0xe8] sm:$0xff]
    %v114 = vld [vmem:[#allocation5 + $0xf0] sm:$0xff]
    %v115 = vld [vmem:[#allocation5 + $0xf8] sm:$0xff]
    %v116 = vld [vmem:[#allocation5 + $0x100] sm:$0xff]
    %v117 = vld [vmem:[#allocation5 + $0x108] sm:$0xff]
    %v118 = vld [vmem:[#allocation5 + $0x110] sm:$0xff]
    %v119 = vld [vmem:[#allocation5 + $0x118] sm:$0xff]
    %v120 = vld [vmem:[#allocation5 + $0x120] sm:$0xff]
    %v121 = vld [vmem:[#allocation5 + $0x128] sm:$0xff]
    %v122 = vld [vmem:[#allocation5 + $0x130] sm:$0xff]
    %v123 = vld [vmem:[#allocation5 + $0x138] sm:$0xff]
    %v124 = vld [vmem:[#allocation5 + $0x140] sm:$0xff]
    %v125 = vld [vmem:[#allocation5 + $0x148] sm:$0xff]
    %v126 = vld [vmem:[#allocation5 + $0x150] sm:$0xff]
    %v127 = vld [vmem:[#allocation5 + $0x158] sm:$0xff]
    %v128 = vld [vmem:[#allocation5 + $0x160] sm:$0xff]
    %v129 = vld [vmem:[#allocation5 + $0x168] sm:$0xff]
    %v130 = vld [vmem:[#allocation5 + $0x170] sm:$0xff]
    %v131 = vld [vmem:[#allocation5 + $0x178] sm:$0xff]
    %v132 = vld [vmem:[#allocation5 + $0x180] sm:$0xff]
    %v133 = vld [vmem:[#allocation5 + $0x188] sm:$0xff]
    %v134 = vld [vmem:[#allocation5 + $0x190] sm:$0xff]
    %v135 = vld [vmem:[#allocation5 + $0x198] sm:$0xff]
    %v136 = vld [vmem:[#allocation5 + $0x1a0] sm:$0xff]
    %v137 = vld [vmem:[#allocation5 + $0x1a8] sm:$0xff]
    %v138 = vld [vmem:[#allocation5 + $0x1b0] sm:$0xff]
    %v139 = vld [vmem:[#allocation5 + $0x1b8] sm:$0xff]
    %v140 = vld [vmem:[#allocation5 + $0x1c0] sm:$0xff]
    %v141 = vld [vmem:[#allocation5 + $0x1c8] sm:$0xff]
    %v142 = vld [vmem:[#allocation5 + $0x1d0] sm:$0xff]
    %v143 = vld [vmem:[#allocation5 + $0x1d8] sm:$0xff]
    %v144 = vld [vmem:[#allocation5 + $0x1e0] sm:$0xff]
    %v145 = vld [vmem:[#allocation5 + $0x1e8] sm:$0xff]
    %v146 = vld [vmem:[#allocation5 + $0x1f0] sm:$0xff]
    %v147 = vld [vmem:[#allocation5 + $0x1f8] sm:$0xff]
    %v148 = vld [vmem:[#allocation5 + $0x200] sm:$0xff]
    %v149 = vld [vmem:[#allocation5 + $0x208] sm:$0xff]
    %v150 = vld [vmem:[#allocation5 + $0x210] sm:$0xff]
    %v151 = vld [vmem:[#allocation5 + $0x218] sm:$0xff]
    %v152 = vld [vmem:[#allocation5 + $0x220] sm:$0xff]
    %v153 = vld [vmem:[#allocation5 + $0x228] sm:$0xff]
    %v154 = vld [vmem:[#allocation5 + $0x230] sm:$0xff]
    %v155 = vld [vmem:[#allocation5 + $0x238] sm:$0xff]
    %v156 = vld [vmem:[#allocation5 + $0x240] sm:$0xff]
    %v157 = vld [vmem:[#allocation5 + $0x248] sm:$0xff]
    %v158 = vld [vmem:[#allocation5 + $0x250] sm:$0xff]
    %v159 = vld [vmem:[#allocation5 + $0x258] sm:$0xff]
    %v160 = vld [vmem:[#allocation5 + $0x260] sm:$0xff]
    %v161 = vld [vmem:[#allocation5 + $0x268] sm:$0xff]
    %v162 = vld [vmem:[#allocation5 + $0x270] sm:$0xff]
    %v163 = vld [vmem:[#allocation5 + $0x278] sm:$0xff]
    %v164 = vld [vmem:[#allocation5 + $0x280] sm:$0xff]
    %v165 = vld [vmem:[#allocation5 + $0x288] sm:$0xff]
    %v166 = vld [vmem:[#allocation5 + $0x290] sm:$0xff]
    %v167 = vld [vmem:[#allocation5 + $0x298] sm:$0xff]
    %v168 = vld [vmem:[#allocation5 + $0x2a0] sm:$0xff]
    %v169 = vld [vmem:[#allocation5 + $0x2a8] sm:$0xff]
    %v170 = vld [vmem:[#allocation5 + $0x2b0] sm:$0xff]
    %v171 = vld [vmem:[#allocation5 + $0x2b8] sm:$0xff]
    %v172 = vld [vmem:[#allocation5 + $0x2c0] sm:$0xff]
    %v173 = vld [vmem:[#allocation5 + $0x2c8] sm:$0xff]
    %v174 = vld [vmem:[#allocation5 + $0x2d0] sm:$0xff]
    %v175 = vld [vmem:[#allocation5 + $0x2d8] sm:$0xff]
    %v176 = vld [vmem:[#allocation5 + $0x2e0] sm:$0xff]
    %v177 = vld [vmem:[#allocation5 + $0x2e8] sm:$0xff]
    %v178 = vld [vmem:[#allocation5 + $0x2f0] sm:$0xff]
    %v179 = vld [vmem:[#allocation5 + $0x2f8] sm:$0xff]
    %v180 = vld [vmem:[%s2] sm:$0x3]
    %v182 = vlaneseq
    %v183 = vshrl.u32 %v182, 7
    %v184 = vsub.s32 0, %v183
    %v185 = vrot.slane %v180, %v184
    %v186 = vlaneseq
    %v187 = vshrl.u32 %v186, 7
    %v188 = vsub.s32 1, %v187
    %v189 = vrot.slane %v180, %v188
    %v195 = vunpack.c.l.b16 %v81
    %v196 = vunpack.c.h.b16 %v81
    %v197 = vunpack.c.l.b16 %v82
    %v198 = vunpack.c.h.b16 %v82
    %v199 = vunpack.c.l.b16 %v83
    %v200 = vunpack.c.h.b16 %v83
    %v201 = vpack.c.b16 %v195, %v195
    %v202 = vpack.c.b16 %v196, %v196
    %v203 = vpack.c.b16 %v197, %v197
    %v204 = vpack.c.b16 %v198, %v198
    %v205 = vpack.c.b16 %v199, %v199
    %v206 = vpack.c.b16 %v200, %v200
    %v309 = vunpack.c.l.b16 %v84
    %v310 = vunpack.c.h.b16 %v84
    %v311 = vunpack.c.l.b16 %v85
    %v312 = vunpack.c.h.b16 %v85
    %v313 = vunpack.c.l.b16 %v86
    %v314 = vunpack.c.h.b16 %v86
    %v315 = vunpack.c.l.b16 %v87
    %v316 = vunpack.c.h.b16 %v87
    %v317 = vunpack.c.l.b16 %v88
    %v318 = vunpack.c.h.b16 %v88
    %v319 = vunpack.c.l.b16 %v89
    %v320 = vunpack.c.h.b16 %v89
    %v321 = vunpack.c.l.b16 %v90
    %v322 = vunpack.c.h.b16 %v90
    %v323 = vunpack.c.l.b16 %v91
    %v324 = vunpack.c.h.b16 %v91
    %v325 = vunpack.c.l.b16 %v92
    %v326 = vunpack.c.h.b16 %v92
    %v327 = vunpack.c.l.b16 %v93
    %v328 = vunpack.c.h.b16 %v93
    %v329 = vunpack.c.l.b16 %v94
    %v330 = vunpack.c.h.b16 %v94
    %v331 = vunpack.c.l.b16 %v95
    %v332 = vunpack.c.h.b16 %v95
    %v333 = vunpack.c.l.b16 %v96
    %v334 = vunpack.c.h.b16 %v96
    %v335 = vunpack.c.l.b16 %v97
    %v336 = vunpack.c.h.b16 %v97
    %v337 = vunpack.c.l.b16 %v98
    %v338 = vunpack.c.h.b16 %v98
    %v339 = vunpack.c.l.b16 %v99
    %v340 = vunpack.c.h.b16 %v99
    %v341 = vunpack.c.l.b16 %v100
    %v342 = vunpack.c.h.b16 %v100
    %v343 = vunpack.c.l.b16 %v101
    %v344 = vunpack.c.h.b16 %v101
    %v345 = vunpack.c.l.b16 %v102
    %v346 = vunpack.c.h.b16 %v102
    %v347 = vunpack.c.l.b16 %v103
    %v348 = vunpack.c.h.b16 %v103
    %v349 = vunpack.c.l.b16 %v104
    %v350 = vunpack.c.h.b16 %v104
    %v351 = vunpack.c.l.b16 %v105
    %v352 = vunpack.c.h.b16 %v105
    %v353 = vunpack.c.l.b16 %v106
    %v354 = vunpack.c.h.b16 %v106
    %v355 = vunpack.c.l.b16 %v107
    %v356 = vunpack.c.h.b16 %v107
    %v357 = vunpack.c.l.b16 %v108
    %v358 = vunpack.c.h.b16 %v108
    %v359 = vunpack.c.l.b16 %v109
    %v360 = vunpack.c.h.b16 %v109
    %v361 = vunpack.c.l.b16 %v110
    %v362 = vunpack.c.h.b16 %v110
    %v363 = vunpack.c.l.b16 %v111
    %v364 = vunpack.c.h.b16 %v111
    %v365 = vunpack.c.l.b16 %v112
    %v366 = vunpack.c.h.b16 %v112
    %v367 = vunpack.c.l.b16 %v113
    %v368 = vunpack.c.h.b16 %v113
    %v369 = vunpack.c.l.b16 %v114
    %v370 = vunpack.c.h.b16 %v114
    %v371 = vunpack.c.l.b16 %v115
    %v372 = vunpack.c.h.b16 %v115
    %v373 = vunpack.c.l.b16 %v116
    %v374 = vunpack.c.h.b16 %v116
    %v375 = vunpack.c.l.b16 %v117
    %v376 = vunpack.c.h.b16 %v117
    %v377 = vunpack.c.l.b16 %v118
    %v378 = vunpack.c.h.b16 %v118
    %v379 = vunpack.c.l.b16 %v119
    %v380 = vunpack.c.h.b16 %v119
    %v381 = vunpack.c.l.b16 %v120
    %v382 = vunpack.c.h.b16 %v120
    %v383 = vunpack.c.l.b16 %v121
    %v384 = vunpack.c.h.b16 %v121
    %v385 = vunpack.c.l.b16 %v122
    %v386 = vunpack.c.h.b16 %v122
    %v387 = vunpack.c.l.b16 %v123
    %v388 = vunpack.c.h.b16 %v123
    %v389 = vunpack.c.l.b16 %v124
    %v390 = vunpack.c.h.b16 %v124
    %v391 = vunpack.c.l.b16 %v125
    %v392 = vunpack.c.h.b16 %v125
    %v393 = vunpack.c.l.b16 %v126
    %v394 = vunpack.c.h.b16 %v126
    %v395 = vunpack.c.l.b16 %v127
    %v396 = vunpack.c.h.b16 %v127
    %v397 = vunpack.c.l.b16 %v128
    %v398 = vunpack.c.h.b16 %v128
    %v399 = vunpack.c.l.b16 %v129
    %v400 = vunpack.c.h.b16 %v129
    %v401 = vunpack.c.l.b16 %v130
    %v402 = vunpack.c.h.b16 %v130
    %v403 = vunpack.c.l.b16 %v131
    %v404 = vunpack.c.h.b16 %v131
    %v405 = vunpack.c.l.b16 %v132
    %v406 = vunpack.c.h.b16 %v132
    %v407 = vunpack.c.l.b16 %v133
    %v408 = vunpack.c.h.b16 %v133
    %v409 = vunpack.c.l.b16 %v134
    %v410 = vunpack.c.h.b16 %v134
    %v411 = vunpack.c.l.b16 %v135
    %v412 = vunpack.c.h.b16 %v135
    %v413 = vunpack.c.l.b16 %v136
    %v414 = vunpack.c.h.b16 %v136
    %v415 = vunpack.c.l.b16 %v137
    %v416 = vunpack.c.h.b16 %v137
    %v417 = vunpack.c.l.b16 %v138
    %v418 = vunpack.c.h.b16 %v138
    %v419 = vunpack.c.l.b16 %v139
    %v420 = vunpack.c.h.b16 %v139
    %v421 = vunpack.c.l.b16 %v140
    %v422 = vunpack.c.h.b16 %v140
    %v423 = vunpack.c.l.b16 %v141
    %v424 = vunpack.c.h.b16 %v141
    %v425 = vunpack.c.l.b16 %v142
    %v426 = vunpack.c.h.b16 %v142
    %v427 = vunpack.c.l.b16 %v143
    %v428 = vunpack.c.h.b16 %v143
    %v429 = vunpack.c.l.b16 %v144
    %v430 = vunpack.c.h.b16 %v144
    %v431 = vunpack.c.l.b16 %v145
    %v432 = vunpack.c.h.b16 %v145
    %v433 = vunpack.c.l.b16 %v146
    %v434 = vunpack.c.h.b16 %v146
    %v435 = vunpack.c.l.b16 %v147
    %v436 = vunpack.c.h.b16 %v147
    %v437 = vunpack.c.l.b16 %v148
    %v438 = vunpack.c.h.b16 %v148
    %v439 = vunpack.c.l.b16 %v149
    %v440 = vunpack.c.h.b16 %v149
    %v441 = vunpack.c.l.b16 %v150
    %v442 = vunpack.c.h.b16 %v150
    %v443 = vunpack.c.l.b16 %v151
    %v444 = vunpack.c.h.b16 %v151
    %v445 = vunpack.c.l.b16 %v152
    %v446 = vunpack.c.h.b16 %v152
    %v447 = vunpack.c.l.b16 %v153
    %v448 = vunpack.c.h.b16 %v153
    %v449 = vunpack.c.l.b16 %v154
    %v450 = vunpack.c.h.b16 %v154
    %v451 = vunpack.c.l.b16 %v155
    %v452 = vunpack.c.h.b16 %v155
    %v453 = vunpack.c.l.b16 %v156
    %v454 = vunpack.c.h.b16 %v156
    %v455 = vunpack.c.l.b16 %v157
    %v456 = vunpack.c.h.b16 %v157
    %v457 = vunpack.c.l.b16 %v158
    %v458 = vunpack.c.h.b16 %v158
    %v459 = vunpack.c.l.b16 %v159
    %v460 = vunpack.c.h.b16 %v159
    %v461 = vunpack.c.l.b16 %v160
    %v462 = vunpack.c.h.b16 %v160
    %v463 = vunpack.c.l.b16 %v161
    %v464 = vunpack.c.h.b16 %v161
    %v465 = vunpack.c.l.b16 %v162
    %v466 = vunpack.c.h.b16 %v162
    %v467 = vunpack.c.l.b16 %v163
    %v468 = vunpack.c.h.b16 %v163
    %v469 = vunpack.c.l.b16 %v164
    %v470 = vunpack.c.h.b16 %v164
    %v471 = vunpack.c.l.b16 %v165
    %v472 = vunpack.c.h.b16 %v165
    %v473 = vunpack.c.l.b16 %v166
    %v474 = vunpack.c.h.b16 %v166
    %v475 = vunpack.c.l.b16 %v167
    %v476 = vunpack.c.h.b16 %v167
    %v477 = vunpack.c.l.b16 %v168
    %v478 = vunpack.c.h.b16 %v168
    %v479 = vunpack.c.l.b16 %v169
    %v480 = vunpack.c.h.b16 %v169
    %v481 = vunpack.c.l.b16 %v170
    %v482 = vunpack.c.h.b16 %v170
    %v483 = vunpack.c.l.b16 %v171
    %v484 = vunpack.c.h.b16 %v171
    %v485 = vunpack.c.l.b16 %v172
    %v486 = vunpack.c.h.b16 %v172
    %v487 = vunpack.c.l.b16 %v173
    %v488 = vunpack.c.h.b16 %v173
    %v489 = vunpack.c.l.b16 %v174
    %v490 = vunpack.c.h.b16 %v174
    %v491 = vunpack.c.l.b16 %v175
    %v492 = vunpack.c.h.b16 %v175
    %v493 = vunpack.c.l.b16 %v176
    %v494 = vunpack.c.h.b16 %v176
    %v495 = vunpack.c.l.b16 %v177
    %v496 = vunpack.c.h.b16 %v177
    %v497 = vunpack.c.l.b16 %v178
    %v498 = vunpack.c.h.b16 %v178
    %v499 = vunpack.c.l.b16 %v179
    %v500 = vunpack.c.h.b16 %v179
    %v501 = vpack.c.b16 %v311, %v309
    %v502 = vpack.c.b16 %v312, %v310
    %v503 = vpack.c.b16 %v315, %v313
    %v504 = vpack.c.b16 %v316, %v314
    %v505 = vpack.c.b16 %v319, %v317
    %v506 = vpack.c.b16 %v320, %v318
    %v507 = vpack.c.b16 %v323, %v321
    %v508 = vpack.c.b16 %v324, %v322
    %v509 = vpack.c.b16 %v327, %v325
    %v510 = vpack.c.b16 %v328, %v326
    %v511 = vpack.c.b16 %v331, %v329
    %v512 = vpack.c.b16 %v332, %v330
    %v513 = vpack.c.b16 %v335, %v333
    %v514 = vpack.c.b16 %v336, %v334
    %v515 = vpack.c.b16 %v339, %v337
    %v516 = vpack.c.b16 %v340, %v338
    %v517 = vpack.c.b16 %v343, %v341
    %v518 = vpack.c.b16 %v344, %v342
    %v519 = vpack.c.b16 %v347, %v345
    %v520 = vpack.c.b16 %v348, %v346
    %v521 = vpack.c.b16 %v351, %v349
    %v522 = vpack.c.b16 %v352, %v350
    %v523 = vpack.c.b16 %v355, %v353
    %v524 = vpack.c.b16 %v356, %v354
    %v525 = vpack.c.b16 %v359, %v357
    %v526 = vpack.c.b16 %v360, %v358
    %v527 = vpack.c.b16 %v363, %v361
    %v528 = vpack.c.b16 %v364, %v362
    %v529 = vpack.c.b16 %v367, %v365
    %v530 = vpack.c.b16 %v368, %v366
    %v531 = vpack.c.b16 %v371, %v369
    %v532 = vpack.c.b16 %v372, %v370
    %v533 = vpack.c.b16 %v375, %v373
    %v534 = vpack.c.b16 %v376, %v374
    %v535 = vpack.c.b16 %v379, %v377
    %v536 = vpack.c.b16 %v380, %v378
    %v537 = vpack.c.b16 %v383, %v381
    %v538 = vpack.c.b16 %v384, %v382
    %v539 = vpack.c.b16 %v387, %v385
    %v540 = vpack.c.b16 %v388, %v386
    %v541 = vpack.c.b16 %v391, %v389
    %v542 = vpack.c.b16 %v392, %v390
    %v543 = vpack.c.b16 %v395, %v393
    %v544 = vpack.c.b16 %v396, %v394
    %v545 = vpack.c.b16 %v399, %v397
    %v546 = vpack.c.b16 %v400, %v398
    %v547 = vpack.c.b16 %v403, %v401
    %v548 = vpack.c.b16 %v404, %v402
    %v549 = vpack.c.b16 %v407, %v405
    %v550 = vpack.c.b16 %v408, %v406
    %v551 = vpack.c.b16 %v411, %v409
    %v552 = vpack.c.b16 %v412, %v410
    %v553 = vpack.c.b16 %v415, %v413
    %v554 = vpack.c.b16 %v416, %v414
    %v555 = vpack.c.b16 %v419, %v417
    %v556 = vpack.c.b16 %v420, %v418
    %v557 = vpack.c.b16 %v423, %v421
    %v558 = vpack.c.b16 %v424, %v422
    %v559 = vpack.c.b16 %v427, %v425
    %v560 = vpack.c.b16 %v428, %v426
    %v561 = vpack.c.b16 %v431, %v429
    %v562 = vpack.c.b16 %v432, %v430
    %v563 = vpack.c.b16 %v435, %v433
    %v564 = vpack.c.b16 %v436, %v434
    %v565 = vpack.c.b16 %v439, %v437
    %v566 = vpack.c.b16 %v440, %v438
    %v567 = vpack.c.b16 %v443, %v441
    %v568 = vpack.c.b16 %v444, %v442
    %v569 = vpack.c.b16 %v447, %v445
    %v570 = vpack.c.b16 %v448, %v446
    %v571 = vpack.c.b16 %v451, %v449
    %v572 = vpack.c.b16 %v452, %v450
    %v573 = vpack.c.b16 %v455, %v453
    %v574 = vpack.c.b16 %v456, %v454
    %v575 = vpack.c.b16 %v459, %v457
    %v576 = vpack.c.b16 %v460, %v458
    %v577 = vpack.c.b16 %v463, %v461
    %v578 = vpack.c.b16 %v464, %v462
    %v579 = vpack.c.b16 %v467, %v465
    %v580 = vpack.c.b16 %v468, %v466
    %v581 = vpack.c.b16 %v471, %v469
    %v582 = vpack.c.b16 %v472, %v470
    %v583 = vpack.c.b16 %v475, %v473
    %v584 = vpack.c.b16 %v476, %v474
    %v585 = vpack.c.b16 %v479, %v477
    %v586 = vpack.c.b16 %v480, %v478
    %v587 = vpack.c.b16 %v483, %v481
    %v588 = vpack.c.b16 %v484, %v482
    %v589 = vpack.c.b16 %v487, %v485
    %v590 = vpack.c.b16 %v488, %v486
    %v591 = vpack.c.b16 %v491, %v489
    %v592 = vpack.c.b16 %v492, %v490
    %v593 = vpack.c.b16 %v495, %v493
    %v594 = vpack.c.b16 %v496, %v494
    %v595 = vpack.c.b16 %v499, %v497
    %v596 = vpack.c.b16 %v500, %v498
    %693 = vmatprep.subr.bf16.mxu0 %v502
    %694 = vmatpush1.bf16.msra.mxu0 %v501
    %695 = vmatprep.subr.bf16.mxu0 %v504
    %696 = vmatpush1.bf16.msra.mxu0 %v503
    %697 = vmatprep.subr.bf16.mxu0 %v506
    %698 = vmatpush1.bf16.msra.mxu0 %v505
    %699 = vmatprep.subr.bf16.mxu0 %v508
    %700 = vmatpush1.bf16.msra.mxu0 %v507
    %701 = vmatprep.subr.bf16.mxu0 %v510
    %702 = vmatpush1.bf16.msra.mxu0 %v509
    %703 = vmatprep.subr.bf16.mxu0 %v512
    %704 = vmatpush1.bf16.msra.mxu0 %v511
    %705 = vmatprep.subr.bf16.mxu0 %v514
    %706 = vmatpush1.bf16.msra.mxu0 %v513
    %707 = vmatprep.subr.bf16.mxu0 %v516
    %708 = vmatpush1.bf16.msra.mxu0 %v515
    %709 = vmatprep.subr.bf16.mxu0 %v518
    %710 = vmatpush1.bf16.msra.mxu0 %v517
    %711 = vmatprep.subr.bf16.mxu0 %v520
    %712 = vmatpush1.bf16.msra.mxu0 %v519
    %713 = vmatprep.subr.bf16.mxu0 %v522
    %714 = vmatpush1.bf16.msra.mxu0 %v521
    %715 = vmatprep.subr.bf16.mxu0 %v524
    %716 = vmatpush1.bf16.msra.mxu0 %v523
    %717 = vmatprep.subr.bf16.mxu0 %v526
    %718 = vmatpush1.bf16.msra.mxu0 %v525
    %719 = vmatprep.subr.bf16.mxu0 %v528
    %720 = vmatpush1.bf16.msra.mxu0 %v527
    %721 = vmatprep.subr.bf16.mxu0 %v530
    %722 = vmatpush1.bf16.msra.mxu0 %v529
    %723 = vmatprep.subr.bf16.mxu0 %v532
    %724 = vmatpush1.bf16.msra.mxu0 %v531
    %725 = vmatprep.mubr.bf16.mxu0 %v202
    %726 = vmatmul.mubr.bf16.gmra.mrb[0].mxu0 %v201
    %v727 = vpop.f32.mrb[0].mxu0
    %v728 = vadd.f32 %v185, %v727
    %v729 = vpop.f32.mrb[0].mxu0
    %v730 = vadd.f32 %v189, %v729
    %v731 = vpop.f32.mrb[0].mxu0
    %v732 = vpop.f32.mrb[0].mxu0
    %733 = vdwg.mxu0
    %734 = vmatprep.subr.bf16.mxu0 %v534
    %735 = vmatpush1.bf16.msra.mxu0 %v533
    %736 = vmatprep.subr.bf16.mxu0 %v536
    %737 = vmatpush1.bf16.msra.mxu0 %v535
    %738 = vmatprep.subr.bf16.mxu0 %v538
    %739 = vmatpush1.bf16.msra.mxu0 %v537
    %740 = vmatprep.subr.bf16.mxu0 %v540
    %741 = vmatpush1.bf16.msra.mxu0 %v539
    %742 = vmatprep.subr.bf16.mxu0 %v542
    %743 = vmatpush1.bf16.msra.mxu0 %v541
    %744 = vmatprep.subr.bf16.mxu0 %v544
    %745 = vmatpush1.bf16.msra.mxu0 %v543
    %746 = vmatprep.subr.bf16.mxu0 %v546
    %747 = vmatpush1.bf16.msra.mxu0 %v545
    %748 = vmatprep.subr.bf16.mxu0 %v548
    %749 = vmatpush1.bf16.msra.mxu0 %v547
    %750 = vmatprep.subr.bf16.mxu0 %v550
    %751 = vmatpush1.bf16.msra.mxu0 %v549
    %752 = vmatprep.subr.bf16.mxu0 %v552
    %753 = vmatpush1.bf16.msra.mxu0 %v551
    %754 = vmatprep.subr.bf16.mxu0 %v554
    %755 = vmatpush1.bf16.msra.mxu0 %v553
    %756 = vmatprep.subr.bf16.mxu0 %v556
    %757 = vmatpush1.bf16.msra.mxu0 %v555
    %758 = vmatprep.subr.bf16.mxu0 %v558
    %759 = vmatpush1.bf16.msra.mxu0 %v557
    %760 = vmatprep.subr.bf16.mxu0 %v560
    %761 = vmatpush1.bf16.msra.mxu0 %v559
    %762 = vmatprep.subr.bf16.mxu0 %v562
    %763 = vmatpush1.bf16.msra.mxu0 %v561
    %764 = vmatprep.subr.bf16.mxu0 %v564
    %765 = vmatpush1.bf16.msra.mxu0 %v563
    %766 = vmatprep.mubr.bf16.mxu0 %v204
    %767 = vmatmul.mubr.bf16.gmra.mrb[0].mxu0 %v203
    %v768 = vpop.f32.mrb[0].mxu0
    %v769 = vadd.f32 %v728, %v768
    %v770 = vpop.f32.mrb[0].mxu0
    %v771 = vadd.f32 %v730, %v770
    %v772 = vpop.f32.mrb[0].mxu0
    %v773 = vpop.f32.mrb[0].mxu0
    %774 = vdwg.mxu0
    %775 = vmatprep.subr.bf16.mxu0 %v566
    %776 = vmatpush1.bf16.msra.mxu0 %v565
    %777 = vmatprep.subr.bf16.mxu0 %v568
    %778 = vmatpush1.bf16.msra.mxu0 %v567
    %779 = vmatprep.subr.bf16.mxu0 %v570
    %780 = vmatpush1.bf16.msra.mxu0 %v569
    %781 = vmatprep.subr.bf16.mxu0 %v572
    %782 = vmatpush1.bf16.msra.mxu0 %v571
    %783 = vmatprep.subr.bf16.mxu0 %v574
    %784 = vmatpush1.bf16.msra.mxu0 %v573
    %785 = vmatprep.subr.bf16.mxu0 %v576
    %786 = vmatpush1.bf16.msra.mxu0 %v575
    %787 = vmatprep.subr.bf16.mxu0 %v578
    %788 = vmatpush1.bf16.msra.mxu0 %v577
    %789 = vmatprep.subr.bf16.mxu0 %v580
    %790 = vmatpush1.bf16.msra.mxu0 %v579
    %791 = vmatprep.subr.bf16.mxu0 %v582
    %792 = vmatpush1.bf16.msra.mxu0 %v581
    %793 = vmatprep.subr.bf16.mxu0 %v584
    %794 = vmatpush1.bf16.msra.mxu0 %v583
    %795 = vmatprep.subr.bf16.mxu0 %v586
    %796 = vmatpush1.bf16.msra.mxu0 %v585
    %797 = vmatprep.subr.bf16.mxu0 %v588
    %798 = vmatpush1.bf16.msra.mxu0 %v587
    %799 = vmatprep.subr.bf16.mxu0 %v590
    %800 = vmatpush1.bf16.msra.mxu0 %v589
    %801 = vmatprep.subr.bf16.mxu0 %v592
    %802 = vmatpush1.bf16.msra.mxu0 %v591
    %803 = vmatprep.subr.bf16.mxu0 %v594
    %804 = vmatpush1.bf16.msra.mxu0 %v593
    %805 = vmatprep.subr.bf16.mxu0 %v596
    %806 = vmatpush1.bf16.msra.mxu0 %v595
    %807 = vmatprep.mubr.bf16.mxu0 %v206
    %808 = vmatmul.mubr.bf16.gmra.mrb[0].mxu0 %v205
    %v809 = vpop.f32.mrb[0].mxu0
    %v810 = vadd.f32 %v769, %v809
    %v811 = vpop.f32.mrb[0].mxu0
    %v812 = vadd.f32 %v771, %v811
    %v813 = vpop.f32.mrb[0].mxu0
    %v814 = vpop.f32.mrb[0].mxu0
    %815 = vdwg.mxu0
    %v816 = vmax.f32 %v810, 0.0
    %v817 = vmax.f32 %v812, 0.0
    %v818 = vpack.c.bf16 %v816, %v816
    %v819 = vpack.c.bf16 %v817, %v817
    %v820 = vld [vmem:[#allocation7] sm:$0xf]
    %v821 = vld [vmem:[#allocation7 + $0x4] sm:$0xf]
    %v822 = vld [vmem:[#allocation7 + $0x8] sm:$0xf]
    %v823 = vld [vmem:[#allocation7 + $0xc] sm:$0xf]
    %v824 = vld [vmem:[#allocation7 + $0x10] sm:$0xf]
    %v825 = vld [vmem:[#allocation7 + $0x14] sm:$0xf]
    %v826 = vld [vmem:[#allocation7 + $0x18] sm:$0xf]
    %v827 = vld [vmem:[#allocation7 + $0x1c] sm:$0xf]
    %v828 = vld [vmem:[#allocation7 + $0x20] sm:$0xf]
    %v829 = vld [vmem:[#allocation7 + $0x24] sm:$0xf]
    %v830 = vld [vmem:[#allocation7 + $0x28] sm:$0xf]
    %v831 = vld [vmem:[#allocation7 + $0x2c] sm:$0xf]
    %v832 = vld [vmem:[#allocation7 + $0x30] sm:$0xf]
    %v833 = vld [vmem:[#allocation7 + $0x34] sm:$0xf]
    %v834 = vld [vmem:[#allocation7 + $0x38] sm:$0xf]
    %v835 = vld [vmem:[#allocation7 + $0x3c] sm:$0xf]
    %v836 = vld [vmem:[#allocation7 + $0x40] sm:$0xf]
    %v837 = vld [vmem:[#allocation7 + $0x44] sm:$0xf]
    %v838 = vld [vmem:[#allocation7 + $0x48] sm:$0xf]
    %v839 = vld [vmem:[#allocation7 + $0x4c] sm:$0xf]
    %v840 = vld [vmem:[#allocation7 + $0x50] sm:$0xf]
    %v841 = vld [vmem:[#allocation7 + $0x54] sm:$0xf]
    %v842 = vld [vmem:[#allocation7 + $0x58] sm:$0xf]
    %v843 = vld [vmem:[#allocation7 + $0x5c] sm:$0xf]
    %v844 = vld [vmem:[#allocation7 + $0x60] sm:$0xf]
    %v845 = vld [vmem:[#allocation7 + $0x64] sm:$0xf]
    %v846 = vld [vmem:[#allocation7 + $0x68] sm:$0xf]
    %v847 = vld [vmem:[#allocation7 + $0x6c] sm:$0xf]
    %v848 = vld [vmem:[#allocation7 + $0x70] sm:$0xf]
    %v849 = vld [vmem:[#allocation7 + $0x74] sm:$0xf]
    %v850 = vld [vmem:[#allocation7 + $0x78] sm:$0xf]
    %v851 = vld [vmem:[#allocation7 + $0x7c] sm:$0xf]
    %v852 = vld [vmem:[%s4] sm:$0x1]
    %v854 = vlaneseq
    %v855 = vshrl.u32 %v854, 7
    %v856 = vsub.s32 0, %v855
    %v857 = vrot.slane %v852, %v856
    %v891 = vunpack.c.l.b16 %v820
    %v892 = vunpack.c.l.b16 %v821
    %v893 = vunpack.c.l.b16 %v822
    %v894 = vunpack.c.l.b16 %v823
    %v895 = vunpack.c.l.b16 %v824
    %v896 = vunpack.c.l.b16 %v825
    %v897 = vunpack.c.l.b16 %v826
    %v898 = vunpack.c.l.b16 %v827
    %v899 = vunpack.c.l.b16 %v828
    %v900 = vunpack.c.l.b16 %v829
    %v901 = vunpack.c.l.b16 %v830
    %v902 = vunpack.c.l.b16 %v831
    %v903 = vunpack.c.l.b16 %v832
    %v904 = vunpack.c.l.b16 %v833
    %v905 = vunpack.c.l.b16 %v834
    %v906 = vunpack.c.l.b16 %v835
    %v907 = vunpack.c.l.b16 %v836
    %v908 = vunpack.c.l.b16 %v837
    %v909 = vunpack.c.l.b16 %v838
    %v910 = vunpack.c.l.b16 %v839
    %v911 = vunpack.c.l.b16 %v840
    %v912 = vunpack.c.l.b16 %v841
    %v913 = vunpack.c.l.b16 %v842
    %v914 = vunpack.c.l.b16 %v843
    %v915 = vunpack.c.l.b16 %v844
    %v916 = vunpack.c.l.b16 %v845
    %v917 = vunpack.c.l.b16 %v846
    %v918 = vunpack.c.l.b16 %v847
    %v919 = vunpack.c.l.b16 %v848
    %v920 = vunpack.c.l.b16 %v849
    %v921 = vunpack.c.l.b16 %v850
    %v922 = vunpack.c.l.b16 %v851
    %v923 = vpack.c.b16 %v892, %v891
    %v924 = vpack.c.b16 %v894, %v893
    %v925 = vpack.c.b16 %v896, %v895
    %v926 = vpack.c.b16 %v898, %v897
    %v927 = vpack.c.b16 %v900, %v899
    %v928 = vpack.c.b16 %v902, %v901
    %v929 = vpack.c.b16 %v904, %v903
    %v930 = vpack.c.b16 %v906, %v905
    %v931 = vpack.c.b16 %v908, %v907
    %v932 = vpack.c.b16 %v910, %v909
    %v933 = vpack.c.b16 %v912, %v911
    %v934 = vpack.c.b16 %v914, %v913
    %v935 = vpack.c.b16 %v916, %v915
    %v936 = vpack.c.b16 %v918, %v917
    %v937 = vpack.c.b16 %v920, %v919
    %v938 = vpack.c.b16 %v922, %v921
    %955 = vmatprep.subr.bf16.mxu0 0
    %956 = vmatpush1.bf16.msra.mxu0 %v923
    %957 = vmatprep.subr.bf16.mxu0 0
    %958 = vmatpush1.bf16.msra.mxu0 %v924
    %959 = vmatprep.subr.bf16.mxu0 0
    %960 = vmatpush1.bf16.msra.mxu0 %v925
    %961 = vmatprep.subr.bf16.mxu0 0
    %962 = vmatpush1.bf16.msra.mxu0 %v926
    %963 = vmatprep.subr.bf16.mxu0 0
    %964 = vmatpush1.bf16.msra.mxu0 %v927
    %965 = vmatprep.subr.bf16.mxu0 0
    %966 = vmatpush1.bf16.msra.mxu0 %v928
    %967 = vmatprep.subr.bf16.mxu0 0
    %968 = vmatpush1.bf16.msra.mxu0 %v929
    %969 = vmatprep.subr.bf16.mxu0 0
    %970 = vmatpush1.bf16.msra.mxu0 %v930
    %971 = vmatprep.subr.bf16.mxu0 0
    %972 = vmatpush1.bf16.msra.mxu0 %v931
    %973 = vmatprep.subr.bf16.mxu0 0
    %974 = vmatpush1.bf16.msra.mxu0 %v932
    %975 = vmatprep.subr.bf16.mxu0 0
    %976 = vmatpush1.bf16.msra.mxu0 %v933
    %977 = vmatprep.subr.bf16.mxu0 0
    %978 = vmatpush1.bf16.msra.mxu0 %v934
    %979 = vmatprep.subr.bf16.mxu0 0
    %980 = vmatpush1.bf16.msra.mxu0 %v935
    %981 = vmatprep.subr.bf16.mxu0 0
    %982 = vmatpush1.bf16.msra.mxu0 %v936
    %983 = vmatprep.subr.bf16.mxu0 0
    %984 = vmatpush1.bf16.msra.mxu0 %v937
    %985 = vmatprep.subr.bf16.mxu0 0
    %986 = vmatpush1.bf16.msra.mxu0 %v938
    %987 = vmatprep.mubr.bf16.mxu0 %v819
    %988 = vmatmul.mubr.bf16.gmra.mrb[0].mxu0 %v818
    %v989 = vpop.f32.mrb[0].mxu0
    %v990 = vadd.f32 %v857, %v989
    %v991 = vpop.f32.mrb[0].mxu0
    %v992 = vpop.f32.mrb[0].mxu0
    %v993 = vpop.f32.mrb[0].mxu0
    %994 = vdwg.mxu0
    %v995 = vmax.f32 %v990, 0.0
    %v996 = vpack.c.bf16 %v995, %v995
    %v997 = vld [vmem:[#allocation8] sm:$0xf]
    %v998 = vld [vmem:[#allocation8 + $0x4] sm:$0xf]
    %v999 = vld [vmem:[#allocation8 + $0x8] sm:$0xf]
    %v1000 = vld [vmem:[#allocation8 + $0xc] sm:$0xf]
    %v1001 = vld [vmem:[#allocation8 + $0x10] sm:$0xf]
    %v1002 = vld [vmem:[#allocation8 + $0x14] sm:$0xf]
    %v1003 = vld [vmem:[#allocation8 + $0x18] sm:$0xf]
    %v1004 = vld [vmem:[#allocation8 + $0x1c] sm:$0xf]
    %v1005 = vld [vmem:[#allocation8 + $0x20] sm:$0xf]
    %v1006 = vld [vmem:[#allocation8 + $0x24] sm:$0xf]
    %v1007 = vld [vmem:[#allocation8 + $0x28] sm:$0xf]
    %v1008 = vld [vmem:[#allocation8 + $0x2c] sm:$0xf]
    %v1009 = vld [vmem:[#allocation8 + $0x30] sm:$0xf]
    %v1010 = vld [vmem:[#allocation8 + $0x34] sm:$0xf]
    %v1011 = vld [vmem:[#allocation8 + $0x38] sm:$0xf]
    %v1012 = vld [vmem:[#allocation8 + $0x3c] sm:$0xf]
    %v1013 = vld [vmem:[%s6] sm:$0x1]
    %v1015 = vlaneseq
    %v1016 = vshrl.u32 %v1015, 7
    %v1017 = vsub.s32 0, %v1016
    %v1018 = vrot.slane %v1013, %v1017
    %v1036 = vunpack.c.l.b16 %v997
    %v1037 = vunpack.c.l.b16 %v998
    %v1038 = vunpack.c.l.b16 %v999
    %v1039 = vunpack.c.l.b16 %v1000
    %v1040 = vunpack.c.l.b16 %v1001
    %v1041 = vunpack.c.l.b16 %v1002
    %v1042 = vunpack.c.l.b16 %v1003
    %v1043 = vunpack.c.l.b16 %v1004
    %v1044 = vunpack.c.l.b16 %v1005
    %v1045 = vunpack.c.l.b16 %v1006
    %v1046 = vunpack.c.l.b16 %v1007
    %v1047 = vunpack.c.l.b16 %v1008
    %v1048 = vunpack.c.l.b16 %v1009
    %v1049 = vunpack.c.l.b16 %v1010
    %v1050 = vunpack.c.l.b16 %v1011
    %v1051 = vunpack.c.l.b16 %v1012
    %v1052 = vpack.c.b16 %v1037, %v1036
    %v1053 = vpack.c.b16 %v1039, %v1038
    %v1054 = vpack.c.b16 %v1041, %v1040
    %v1055 = vpack.c.b16 %v1043, %v1042
    %v1056 = vpack.c.b16 %v1045, %v1044
    %v1057 = vpack.c.b16 %v1047, %v1046
    %v1058 = vpack.c.b16 %v1049, %v1048
    %v1059 = vpack.c.b16 %v1051, %v1050
    %1068 = vmatprep.subr.bf16.mxu0 0
    %1069 = vmatpush1.bf16.msra.mxu0 %v1052
    %1070 = vmatprep.subr.bf16.mxu0 0
    %1071 = vmatpush1.bf16.msra.mxu0 %v1053
    %1072 = vmatprep.subr.bf16.mxu0 0
    %1073 = vmatpush1.bf16.msra.mxu0 %v1054
    %1074 = vmatprep.subr.bf16.mxu0 0
    %1075 = vmatpush1.bf16.msra.mxu0 %v1055
    %1076 = vmatprep.subr.bf16.mxu0 0
    %1077 = vmatpush1.bf16.msra.mxu0 %v1056
    %1078 = vmatprep.subr.bf16.mxu0 0
    %1079 = vmatpush1.bf16.msra.mxu0 %v1057
    %1080 = vmatprep.subr.bf16.mxu0 0
    %1081 = vmatpush1.bf16.msra.mxu0 %v1058
    %1082 = vmatprep.subr.bf16.mxu0 0
    %1083 = vmatpush1.bf16.msra.mxu0 %v1059
    %1084 = vmatprep.subr.bf16.mxu0 0
    %1085 = vmatpush1.bf16.msra.mxu0 0
    %1086 = vmatprep.subr.bf16.mxu0 0
    %1087 = vmatpush1.bf16.msra.mxu0 0
    %1088 = vmatprep.subr.bf16.mxu0 0
    %1089 = vmatpush1.bf16.msra.mxu0 0
    %1090 = vmatprep.subr.bf16.mxu0 0
    %1091 = vmatpush1.bf16.msra.mxu0 0
    %1092 = vmatprep.subr.bf16.mxu0 0
    %1093 = vmatpush1.bf16.msra.mxu0 0
    %1094 = vmatprep.subr.bf16.mxu0 0
    %1095 = vmatpush1.bf16.msra.mxu0 0
    %1096 = vmatprep.subr.bf16.mxu0 0
    %1097 = vmatpush1.bf16.msra.mxu0 0
    %1098 = vmatprep.subr.bf16.mxu0 0
    %1099 = vmatpush1.bf16.msra.mxu0 0
    %1100 = vmatprep.mubr.bf16.mxu0 0
    %1101 = vmatmul.mubr.bf16.gmra.mrb[0].mxu0 %v996
    %v1102 = vpop.f32.mrb[0].mxu0
    %v1103 = vadd.f32 %v1018, %v1102
    %v1104 = vpop.f32.mrb[0].mxu0
    %v1105 = vpop.f32.mrb[0].mxu0
    %v1106 = vpop.f32.mrb[0].mxu0
    %1107 = vdwg.mxu0
    %1108 = vst [vmem:[#allocation10] sm:$0xff] %v1103
    // Predicated region
    $region46: #{tpu_custom_call.1} parent=1 // pred_check
      _
    $region47: #{tpu_custom_call.1} parent=1 // pred_check_branch
      %1110 = sbr.rel (0) target = $region49
    $region48: #{tpu_custom_call.1} parent=1 // pred_region
      %s1112 = ssub.s32 128, 128
      %1113 = vsyncadd [#allocation4], %s1112
      %s1115 = sshll.u32 [#allocation10], 4
      %s1116 = int_to_ptr.vmem [resolvable:$true] %s1115
      %1118 = dma.vmem_to_hbm [thread:$0]  %s1116, 128, %s7, [#allocation4]
    $region49: #{tpu_custom_call.1} parent=1 // pred_fallthru
      _
    // Predicated region
    $region50: #{tpu_custom_call.1} parent=1 // pred_check
      _
    $region51: #{tpu_custom_call.1} parent=1 // pred_check_branch
      %1120 = sbr.rel (0) target = $region53
    $region52: #{tpu_custom_call.1} parent=1 // pred_region
      %1121 = dma.done [#allocation4], 128
    $region53: #{tpu_custom_call.1} parent=1 // pred_fallthru
      _
    %1122 = vsyncpa [#allocation3], 1
    %1123 = vsyncpa [#allocation6], 1
    %1124 = vsyncpa [#allocation9], 1
    %1125 = vsyncpa [#allocation4], 1

</llo_original>
